<compile_context>
chip_gen: v7x
topology: tpu7x:2x2x1
jax: 0.10.0
libtpu: 0.0.40
codegen_flags: <defaults>
</compile_context>

<pallas_src>
import functools
import math

import jax
import jax.numpy as jnp
from jax.experimental import pallas as pl
from jax.experimental.pallas import tpu as pltpu

_MIB = 1024 * 1024


def _round_up(x, m):
    return ((x + m - 1) // m) * m


def _pick_tile(total, target, align=128):
    """Largest multiple of `align` that divides `total` (a multiple of `align`)
    and does not exceed `target`."""
    best = align
    t = align
    limit = min(target, total)
    while t <= limit:
        if total % t == 0:
            best = t
        t += align
    return best


# --------------------------------------------------------------------------
# Kernel 1: support = x @ W   (f32 compute on the MXU, bf16 output)
# --------------------------------------------------------------------------
def _support_kernel(x_ref, w_ref, out_ref):
    out_ref[...] = jnp.dot(
        x_ref[...], w_ref[...], preferred_element_type=jnp.float32
    ).astype(out_ref.dtype)


# --------------------------------------------------------------------------
# Kernel 2: out = adj @ support + bias
#   rows x reduction grid, bf16 inputs, f32 accumulation directly into out_ref.
# --------------------------------------------------------------------------
def _aggregate_kernel(adj_ref, sup_ref, b_ref, out_ref, *, tk, sup_resident):
    k = pl.program_id(1)

    @pl.when(k == 0)
    def _():
        out_ref[...] = jnp.zeros_like(out_ref)

    if sup_resident:
        # Whole support matrix is VMEM-resident (constant block index -> one DMA);
        # slice out the current reduction chunk.
        sup = sup_ref[pl.ds(pl.multiple_of(k * tk, tk), tk), :]
    else:
        sup = sup_ref[...]

    out_ref[...] += jnp.dot(adj_ref[...], sup, preferred_element_type=jnp.float32)

    @pl.when(k == pl.num_programs(1) - 1)
    def _():
        # Bias add is cheap VPU filler; bias buffer is zeros when bias is None,
        # so a single kernel covers both cases.
        out_ref[...] += b_ref[...]


def graph_convolution(x, adj, weight, bias=None):
    """Pallas GCN layer:  adj @ (x @ weight) + bias.

    x:      [N, F_in]     float
    adj:    [N, N]        float (dense adjacency)
    weight: [F_in, F_out] float
    bias:   [F_out]       float or None
    returns [N, F_out]    x.dtype
    """
    n, f_in = x.shape
    f_out = weight.shape[1]
    out_dtype = x.dtype

    x = x.astype(jnp.float32)
    weight = weight.astype(jnp.float32)

    # Lane-dense layouts: pad feature dims to 128, node dim to 128.
    f_in_p = _round_up(f_in, 128)
    f_out_p = _round_up(f_out, 128)
    n_p = _round_up(n, 128)

    # ---- tile selection (must divide the padded extents exactly) ------------
    # Output block tm*f_out_p*4 kept around ~4 MiB so double-buffering fits v7x.
    tm_target = max(128, min(1024, ((4 * _MIB) // (f_out_p * 4)) // 128 * 128))
    tm = _pick_tile(n_p, tm_target)
    if tm == n_p and n_p >= 256:
        # Give the "parallel" row axis at least 2 tiles so both v7x TCs get work.
        tm = _pick_tile(n_p, n_p // 2)
    tk = _pick_tile(n_p, 512)
    tm_s = _pick_tile(n_p, 512)  # row tile for the support kernel

    # ---- VMEM budget (generation-aware: v7x 64 MiB, v5e/v6e 128 MiB) --------
    try:
        vmem_cap = pltpu.get_tpu_info().vmem_capacity_bytes
    except Exception:  # conservative fallback if the query is unavailable
        vmem_cap = 64 * _MIB
    vmem_limit = int(min(max(vmem_cap - 16 * _MIB, 32 * _MIB), 96 * _MIB))

    # Resident support (bf16) only if it fits alongside the working set,
    # accounting for the pipeline's double buffering.
    sup_bytes = n_p * f_out_p * 2
    working = 2 * (tm * tk * 2) + 2 * (tm * f_out_p * 4) + 2 * (f_out_p * 4)
    sup_resident = (2 * sup_bytes + working + 4 * _MIB) <= vmem_limit

    # ---- padding / casting (each is a single fused XLA pass) ----------------
    if n_p != n or f_in_p != f_in:
        x_p = jnp.pad(x, ((0, n_p - n), (0, f_in_p - f_in)))
    else:
        x_p = x
    if f_in_p != f_in or f_out_p != f_out:
        w_p = jnp.pad(weight, ((0, f_in_p - f_in), (0, f_out_p - f_out)))
    else:
        w_p = weight
    adj_bf = adj.astype(jnp.bfloat16)  # halves HBM bytes on the N^2 stream
    if n_p != n:
        adj_bf = jnp.pad(adj_bf, ((0, n_p - n), (0, n_p - n)))
    if bias is None:
        b_p = jnp.zeros((1, f_out_p), jnp.float32)
    else:
        b_p = jnp.pad(
            bias.astype(jnp.float32).reshape(1, f_out),
            ((0, 0), (0, f_out_p - f_out)),
        )

    # ---- support = x @ W  (bf16 output) -------------------------------------
    # TODO(synk): tile f_in with a reduction grid axis if f_in_p*f_out_p*4 ever
    # approaches the VMEM limit (not the case for typical GCN feature widths).
    support = pl.pallas_call(
        _support_kernel,
        out_shape=jax.ShapeDtypeStruct((n_p, f_out_p), jnp.bfloat16),
        grid=(n_p // tm_s,),
        in_specs=[
            pl.BlockSpec((tm_s, f_in_p), lambda i: (i, 0)),
            pl.BlockSpec((f_in_p, f_out_p), lambda i: (0, 0)),
        ],
        out_specs=pl.BlockSpec((tm_s, f_out_p), lambda i: (i, 0)),
        compiler_params=pltpu.CompilerParams(
            dimension_semantics=("parallel",),
            vmem_limit_bytes=vmem_limit,
        ),
        cost_estimate=pl.CostEstimate(
            flops=2 * n_p * f_in_p * f_out_p,
            transcendentals=0,
            bytes_accessed=4 * (n_p * f_in_p + f_in_p * f_out_p)
            + 2 * n_p * f_out_p,
        ),
    )(x_p, w_p)

    # ---- out = adj @ support + bias -----------------------------------------
    if sup_resident:
        sup_spec = pl.BlockSpec((n_p, f_out_p), lambda i, k: (0, 0))
        sup_reads = 1
    else:
        sup_spec = pl.BlockSpec((tk, f_out_p), lambda i, k: (k, 0))
        sup_reads = n_p // tm

    out_p = pl.pallas_call(
        functools.partial(_aggregate_kernel, tk=tk, sup_resident=sup_resident),
        out_shape=jax.ShapeDtypeStruct((n_p, f_out_p), jnp.float32),
        grid=(n_p // tm, n_p // tk),
        in_specs=[
            pl.BlockSpec((tm, tk), lambda i, k: (i, k)),  # adj tile (bf16)
            sup_spec,                                      # support (bf16)
            pl.BlockSpec((1, f_out_p), lambda i, k: (0, 0)),  # bias (f32)
        ],
        out_specs=pl.BlockSpec((tm, f_out_p), lambda i, k: (i, 0)),
        compiler_params=pltpu.CompilerParams(
            dimension_semantics=("parallel", "arbitrary"),
            vmem_limit_bytes=vmem_limit,
        ),
        cost_estimate=pl.CostEstimate(
            flops=2 * n_p * n_p * f_out_p,
            transcendentals=0,
            bytes_accessed=2 * n_p * n_p
            + sup_reads * 2 * n_p * f_out_p
            + 4 * n_p * f_out_p
            + 4 * f_out_p,
        ),
    )(adj_bf, support, b_p)

    return out_p[:n, :f_out].astype(out_dtype)


def init_gcn_params(key, in_features, out_features, bias=True):
    """Deterministic init mirroring reset_parameters(): U(-stdv, stdv),
    stdv = 1/sqrt(out_features)."""
    stdv = 1.0 / math.sqrt(out_features)
    k_w, k_b = jax.random.split(key)
    weight = jax.random.uniform(
        k_w, (in_features, out_features), jnp.float32, minval=-stdv, maxval=stdv
    )
    b = (
        jax.random.uniform(
            k_b, (out_features,), jnp.float32, minval=-stdv, maxval=stdv
        )
        if bias
        else None
    )
    return weight, b


if __name__ == "__main__":
    key = jax.random.PRNGKey(0)
    k_x, k_adj, k_param = jax.random.split(key, 3)

    # Small GCN problem: 16 nodes, 32 input features, 8 output features.
    N, F_IN, F_OUT = 16, 32, 8

    x = jax.random.normal(k_x, (N, F_IN), jnp.float32)

    # Symmetric, row-normalized dense adjacency (self loops included).
    a = jax.random.uniform(k_adj, (N, N), jnp.float32)
    a = (a + a.T) * 0.5 + jnp.eye(N, dtype=jnp.float32)
    adj = a / jnp.sum(a, axis=1, keepdims=True)

    weight, bias = init_gcn_params(k_param, F_IN, F_OUT, bias=True)

    # With bias. adj/support are fed to the MXU in bf16 (f32 accumulation), so
    # compare against the f32 reference with a correspondingly loose tolerance.
    out = graph_convolution(x, adj, weight, bias)
    out = jax.block_until_ready(out)
    ref = adj @ (x @ weight) + bias
    assert out.shape == (N, F_OUT)
    assert jnp.allclose(out, ref, atol=3e-2, rtol=3e-2)

    # Tighter check against a bf16-quantization-matched reference.
    adj_q = adj.astype(jnp.bfloat16).astype(jnp.float32)
    sup_q = (x @ weight).astype(jnp.bfloat16).astype(jnp.float32)
    ref_q = adj_q @ sup_q + bias
    assert jnp.allclose(out, ref_q, atol=5e-3, rtol=5e-3)

    # Without bias (same kernels, zero bias buffer).
    out_nb = graph_convolution(x, adj, weight, None)
    out_nb = jax.block_until_ready(out_nb)
    ref_nb = adj @ (x @ weight)
    assert jnp.allclose(out_nb, ref_nb, atol=3e-2, rtol=3e-2)

    print("KERNEL_OK")
</pallas_src>

<mosaic_0001>
module attributes {stable_mosaic.version = 11 : i64} {
  func.func @_support_kernel(%arg0: i32, %arg1: memref<128x128xf32, #tpu.memory_space<vmem>>, %arg2: memref<128x128xf32, #tpu.memory_space<vmem>>, %arg3: memref<128x128xbf16, #tpu.memory_space<vmem>>) attributes {dimension_semantics = [#tpu.dimension_semantics<parallel>], iteration_bounds = array<i64: 1>, scalar_prefetch = 0 : i64, scratch_operands = 0 : i64, tpu.core_type = #tpu.core_type<tc>, window_params = [{transform_indices = @transform_0, window_bounds = array<i64: 128, 128>}, {pipeline_mode = #tpu.pipeline_mode<synchronous>, transform_indices = @transform_1, window_bounds = array<i64: 128, 128>}, {transform_indices = @transform_2, window_bounds = array<i64: 128, 128>}]} {
    %c0 = arith.constant 0 : index
    %c0_0 = arith.constant 0 : index
    %0 = vector.load %arg1[%c0, %c0_0] : memref<128x128xf32, #tpu.memory_space<vmem>>, vector<128x128xf32>
    %c0_1 = arith.constant 0 : index
    %c0_2 = arith.constant 0 : index
    %1 = vector.load %arg2[%c0_1, %c0_2] : memref<128x128xf32, #tpu.memory_space<vmem>>, vector<128x128xf32>
    %cst = arith.constant dense<0.000000e+00> : vector<128x128xf32>
    %2 = tpu.matmul %0, %1, %cst {dimension_numbers = #tpu.dot_dimension_numbers<[1], [0], [0], [1], [0, 0, 1, 1], [], []>} : vector<128x128xf32>, vector<128x128xf32>, vector<128x128xf32> -> vector<128x128xf32>
    %3 = arith.truncf %2 : vector<128x128xf32> to vector<128x128xbf16>
    %c0_3 = arith.constant 0 : index
    %c0_4 = arith.constant 0 : index
    %4 = vector.load %arg3[%c0_3, %c0_4] : memref<128x128xbf16, #tpu.memory_space<vmem>>, vector<128x128xbf16>
    tpu.vector_store %arg3[%c0_3, %c0_4], %3 {strides = array<i32>} : memref<128x128xbf16, #tpu.memory_space<vmem>>, vector<128x128xbf16>,
    return
  }
  func.func @transform_0(%arg0: i32) -> (i32, i32) {
    %c0_i32 = arith.constant 0 : i32
    %c0_i32_0 = arith.constant 0 : i32
    return %arg0, %c0_i32 : i32, i32
  }
  func.func @transform_1(%arg0: i32) -> (i32, i32) {
    %c0_i32 = arith.constant 0 : i32
    %c0_i32_0 = arith.constant 0 : i32
    %c0_i32_1 = arith.constant 0 : i32
    return %c0_i32, %c0_i32_0 : i32, i32
  }
  func.func @transform_2(%arg0: i32) -> (i32, i32) {
    %c0_i32 = arith.constant 0 : i32
    %c0_i32_0 = arith.constant 0 : i32
    return %arg0, %c0_i32 : i32, i32
  }
}

</mosaic_0001>

<llo_original>
// kernel: tpu_custom_call.1
$region0: #{tpu_custom_call.1}
  #allocation0 [shape = 'u32[]', space=smem, size = 0x4, offset = 0x4, fixed_abs, tag = 'smem constant byte address 0x4 - core index']
  #allocation1 [shape = 'u32[144,128]{1,0:T(1,128)}', space=vmem, size = 0x12000, scoped, tag = 'internal scratch']
  %s0 = inlined_call_operand.hbm [shape: f32[128,128], index: 0, kind: input, shape index: {}]
  %s1 = inlined_call_operand.hbm [shape: f32[128,128], index: 1, kind: input, shape index: {}]
  %s2 = inlined_call_operand.hbm [shape: bf16[128,128], index: 2, kind: output, shape index: {}]
  %s3 = sld [smem:[#allocation0]]
  $region26: #{tpu_custom_call.1} parent=0
    _
  %s5 = ssub.s32 1, %s3
  %s6 = scalar_select 0, %s5, %s3
  $region1: #{tpu_custom_call.1} parent=0
    #allocation2 [shape = 'u8[65536]{0}', space=vmem, size = 0x10000, scoped, tag = 'input window, operand 0, single buffered']
    #allocation3 [shape = 's32[1]{0}', space=sflag, size = 0x4, scoped, tag = 'scoped memory for tpu_custom_call.1']
    #allocation4 [shape = 's32[1]{0}', space=sflag, size = 0x4, scoped, tag = 'scoped memory for tpu_custom_call.1']
    #allocation5 [shape = 'u8[65536]{0}', space=vmem, size = 0x10000, scoped, tag = 'input window, operand 1, single buffered']
    #allocation6 [shape = 's32[1]{0}', space=sflag, size = 0x4, scoped, tag = 'scoped memory for tpu_custom_call.1']
    #allocation7 [shape = 'u8[32768]{0}', space=vmem, size = 0x8000, scoped, tag = 'output window, operand 0, single buffered']
    %7 = vsyncpa [#allocation3], 0
    %8 = vsyncpa [#allocation6], 0
    %9 = vsyncpa [#allocation4], 0
    // Predicated region
    $region2: #{tpu_custom_call.1} parent=1 // pred_check
      _
    $region3: #{tpu_custom_call.1} parent=1 // pred_check_branch
      %11 = sbr.rel (0) target = $region5
    $region4: #{tpu_custom_call.1} parent=1 // pred_region
      %s13 = ssub.s32 2048, 2048
      %14 = vsyncadd [#allocation3], %s13
      %s15 = sshll.u32 [#allocation2], 4
      %s16 = int_to_ptr.vmem [resolvable:$true] %s15
      %21 = dma.hbm_to_vmem [thread:$0]  %s0, 2048, %s16, [#allocation3], 128, 128, 8
    $region5: #{tpu_custom_call.1} parent=1 // pred_fallthru
      _
    // Predicated region
    $region6: #{tpu_custom_call.1} parent=1 // pred_check
      _
    $region7: #{tpu_custom_call.1} parent=1 // pred_check_branch
      %23 = sbr.rel (0) target = $region9
    $region8: #{tpu_custom_call.1} parent=1 // pred_region
      %s25 = ssub.s32 2048, 2048
      %26 = vsyncadd [#allocation6], %s25
      %s27 = sshll.u32 [#allocation5], 4
      %s28 = int_to_ptr.vmem [resolvable:$true] %s27
      %33 = dma.hbm_to_vmem [thread:$0]  %s1, 2048, %s28, [#allocation6], 128, 128, 8
    $region9: #{tpu_custom_call.1} parent=1 // pred_fallthru
      _
    // Predicated region
    $region10: #{tpu_custom_call.1} parent=1 // pred_check
      _
    $region11: #{tpu_custom_call.1} parent=1 // pred_check_branch
      %35 = sbr.rel (0) target = $region13
    $region12: #{tpu_custom_call.1} parent=1 // pred_region
      %36 = dma.done [#allocation3], 2048
    $region13: #{tpu_custom_call.1} parent=1 // pred_fallthru
      _
    // Predicated region
    $region14: #{tpu_custom_call.1} parent=1 // pred_check
      _
    $region15: #{tpu_custom_call.1} parent=1 // pred_check_branch
      %38 = sbr.rel (0) target = $region17
    $region16: #{tpu_custom_call.1} parent=1 // pred_region
      %39 = dma.done [#allocation6], 2048
    $region17: #{tpu_custom_call.1} parent=1 // pred_fallthru
      _
    %v40 = vld [vmem:[#allocation2] sm:$0xff]
    %v41 = vld [vmem:[#allocation2 + $0x8] sm:$0xff]
    %v42 = vld [vmem:[#allocation2 + $0x10] sm:$0xff]
    %v43 = vld [vmem:[#allocation2 + $0x18] sm:$0xff]
    %v44 = vld [vmem:[#allocation2 + $0x20] sm:$0xff]
    %v45 = vld [vmem:[#allocation2 + $0x28] sm:$0xff]
    %v46 = vld [vmem:[#allocation2 + $0x30] sm:$0xff]
    %v47 = vld [vmem:[#allocation2 + $0x38] sm:$0xff]
    %v48 = vld [vmem:[#allocation2 + $0x40] sm:$0xff]
    %v49 = vld [vmem:[#allocation2 + $0x48] sm:$0xff]
    %v50 = vld [vmem:[#allocation2 + $0x50] sm:$0xff]
    %v51 = vld [vmem:[#allocation2 + $0x58] sm:$0xff]
    %v52 = vld [vmem:[#allocation2 + $0x60] sm:$0xff]
    %v53 = vld [vmem:[#allocation2 + $0x68] sm:$0xff]
    %v54 = vld [vmem:[#allocation2 + $0x70] sm:$0xff]
    %v55 = vld [vmem:[#allocation2 + $0x78] sm:$0xff]
    %v56 = vld [vmem:[#allocation5] sm:$0xff]
    %v57 = vld [vmem:[#allocation5 + $0x8] sm:$0xff]
    %v58 = vld [vmem:[#allocation5 + $0x10] sm:$0xff]
    %v59 = vld [vmem:[#allocation5 + $0x18] sm:$0xff]
    %v60 = vld [vmem:[#allocation5 + $0x20] sm:$0xff]
    %v61 = vld [vmem:[#allocation5 + $0x28] sm:$0xff]
    %v62 = vld [vmem:[#allocation5 + $0x30] sm:$0xff]
    %v63 = vld [vmem:[#allocation5 + $0x38] sm:$0xff]
    %v64 = vld [vmem:[#allocation5 + $0x40] sm:$0xff]
    %v65 = vld [vmem:[#allocation5 + $0x48] sm:$0xff]
    %v66 = vld [vmem:[#allocation5 + $0x50] sm:$0xff]
    %v67 = vld [vmem:[#allocation5 + $0x58] sm:$0xff]
    %v68 = vld [vmem:[#allocation5 + $0x60] sm:$0xff]
    %v69 = vld [vmem:[#allocation5 + $0x68] sm:$0xff]
    %v70 = vld [vmem:[#allocation5 + $0x70] sm:$0xff]
    %v71 = vld [vmem:[#allocation5 + $0x78] sm:$0xff]
    %72 = vmatprep.subr.mxu0 0.0
    %73 = vmatpush1.msra.mxu0 %v56
    %74 = vmatprep.subr.mxu0 0.0
    %75 = vmatpush1.msra.mxu0 %v57
    %76 = vmatprep.subr.mxu0 0.0
    %77 = vmatpush1.msra.mxu0 %v58
    %78 = vmatprep.subr.mxu0 0.0
    %79 = vmatpush1.msra.mxu0 %v59
    %80 = vmatprep.subr.mxu0 0.0
    %81 = vmatpush1.msra.mxu0 %v60
    %82 = vmatprep.subr.mxu0 0.0
    %83 = vmatpush1.msra.mxu0 %v61
    %84 = vmatprep.subr.mxu0 0.0
    %85 = vmatpush1.msra.mxu0 %v62
    %86 = vmatprep.subr.mxu0 0.0
    %87 = vmatpush1.msra.mxu0 %v63
    %88 = vmatprep.subr.mxu0 0.0
    %89 = vmatpush1.msra.mxu0 %v64
    %90 = vmatprep.subr.mxu0 0.0
    %91 = vmatpush1.msra.mxu0 %v65
    %92 = vmatprep.subr.mxu0 0.0
    %93 = vmatpush1.msra.mxu0 %v66
    %94 = vmatprep.subr.mxu0 0.0
    %95 = vmatpush1.msra.mxu0 %v67
    %96 = vmatprep.subr.mxu0 0.0
    %97 = vmatpush1.msra.mxu0 %v68
    %98 = vmatprep.subr.mxu0 0.0
    %99 = vmatpush1.msra.mxu0 %v69
    %100 = vmatprep.subr.mxu0 0.0
    %101 = vmatpush1.msra.mxu0 %v70
    %102 = vmatprep.subr.mxu0 0.0
    %103 = vmatpush1.msra.mxu0 %v71
    %104 = vmatprep.subr.mxu0 0.0
    %105 = vmatpush1.msra.mxu0 0.0
    %106 = vmatprep.subr.mxu0 0.0
    %107 = vmatpush1.msra.mxu0 0.0
    %108 = vmatprep.subr.mxu0 0.0
    %109 = vmatpush1.msra.mxu0 0.0
    %110 = vmatprep.subr.mxu0 0.0
    %111 = vmatpush1.msra.mxu0 0.0
    %112 = vmatprep.subr.mxu0 0.0
    %113 = vmatpush1.msra.mxu0 0.0
    %114 = vmatprep.subr.mxu0 0.0
    %115 = vmatpush1.msra.mxu0 0.0
    %116 = vmatprep.subr.mxu0 0.0
    %117 = vmatpush1.msra.mxu0 0.0
    %118 = vmatprep.subr.mxu0 0.0
    %119 = vmatpush1.msra.mxu0 0.0
    %120 = vmatprep.subr.mxu0 0.0
    %121 = vmatpush1.msra.mxu0 0.0
    %122 = vmatprep.subr.mxu0 0.0
    %123 = vmatpush1.msra.mxu0 0.0
    %124 = vmatprep.subr.mxu0 0.0
    %125 = vmatpush1.msra.mxu0 0.0
    %126 = vmatprep.subr.mxu0 0.0
    %127 = vmatpush1.msra.mxu0 0.0
    %128 = vmatprep.subr.mxu0 0.0
    %129 = vmatpush1.msra.mxu0 0.0
    %130 = vmatprep.subr.mxu0 0.0
    %131 = vmatpush1.msra.mxu0 0.0
    %132 = vmatprep.subr.mxu0 0.0
    %133 = vmatpush1.msra.mxu0 0.0
    %134 = vmatprep.subr.mxu0 0.0
    %135 = vmatpush1.msra.mxu0 0.0
    %136 = vmatprep.mubr.f32.mxu0 0.0
    %137 = vmatmul.mubr.f32.gmra.mrb[0].mxu0 %v40
    %v138 = vpop.f32.mrb[0].mxu0
    %v139 = vadd.f32 0.0, %v138
    %v140 = vpop.f32.mrb[0].mxu0
    %141 = vmatprep.mubr.f32.mxu0 0.0
    %142 = vmatmul.mubr.f32.gmra.mrb[0].mxu0 %v41
    %v143 = vpop.f32.mrb[0].mxu0
    %v144 = vadd.f32 0.0, %v143
    %v145 = vpop.f32.mrb[0].mxu0
    %146 = vmatprep.mubr.f32.mxu0 0.0
    %147 = vmatmul.mubr.f32.gmra.mrb[0].mxu0 %v42
    %v148 = vpop.f32.mrb[0].mxu0
    %v149 = vadd.f32 0.0, %v148
    %v150 = vpop.f32.mrb[0].mxu0
    %151 = vmatprep.mubr.f32.mxu0 0.0
    %152 = vmatmul.mubr.f32.gmra.mrb[0].mxu0 %v43
    %v153 = vpop.f32.mrb[0].mxu0
    %v154 = vadd.f32 0.0, %v153
    %v155 = vpop.f32.mrb[0].mxu0
    %156 = vmatprep.mubr.f32.mxu0 0.0
    %157 = vmatmul.mubr.f32.gmra.mrb[0].mxu0 %v44
    %v158 = vpop.f32.mrb[0].mxu0
    %v159 = vadd.f32 0.0, %v158
    %v160 = vpop.f32.mrb[0].mxu0
    %161 = vmatprep.mubr.f32.mxu0 0.0
    %162 = vmatmul.mubr.f32.gmra.mrb[0].mxu0 %v45
    %v163 = vpop.f32.mrb[0].mxu0
    %v164 = vadd.f32 0.0, %v163
    %v165 = vpop.f32.mrb[0].mxu0
    %166 = vmatprep.mubr.f32.mxu0 0.0
    %167 = vmatmul.mubr.f32.gmra.mrb[0].mxu0 %v46
    %v168 = vpop.f32.mrb[0].mxu0
    %v169 = vadd.f32 0.0, %v168
    %v170 = vpop.f32.mrb[0].mxu0
    %171 = vmatprep.mubr.f32.mxu0 0.0
    %172 = vmatmul.mubr.f32.gmra.mrb[0].mxu0 %v47
    %v173 = vpop.f32.mrb[0].mxu0
    %v174 = vadd.f32 0.0, %v173
    %v175 = vpop.f32.mrb[0].mxu0
    %176 = vmatprep.mubr.f32.mxu0 0.0
    %177 = vmatmul.mubr.f32.gmra.mrb[0].mxu0 %v48
    %v178 = vpop.f32.mrb[0].mxu0
    %v179 = vadd.f32 0.0, %v178
    %v180 = vpop.f32.mrb[0].mxu0
    %181 = vmatprep.mubr.f32.mxu0 0.0
    %182 = vmatmul.mubr.f32.gmra.mrb[0].mxu0 %v49
    %v183 = vpop.f32.mrb[0].mxu0
    %v184 = vadd.f32 0.0, %v183
    %v185 = vpop.f32.mrb[0].mxu0
    %186 = vmatprep.mubr.f32.mxu0 0.0
    %187 = vmatmul.mubr.f32.gmra.mrb[0].mxu0 %v50
    %v188 = vpop.f32.mrb[0].mxu0
    %v189 = vadd.f32 0.0, %v188
    %v190 = vpop.f32.mrb[0].mxu0
    %191 = vmatprep.mubr.f32.mxu0 0.0
    %192 = vmatmul.mubr.f32.gmra.mrb[0].mxu0 %v51
    %v193 = vpop.f32.mrb[0].mxu0
    %v194 = vadd.f32 0.0, %v193
    %v195 = vpop.f32.mrb[0].mxu0
    %196 = vmatprep.mubr.f32.mxu0 0.0
    %197 = vmatmul.mubr.f32.gmra.mrb[0].mxu0 %v52
    %v198 = vpop.f32.mrb[0].mxu0
    %v199 = vadd.f32 0.0, %v198
    %v200 = vpop.f32.mrb[0].mxu0
    %201 = vmatprep.mubr.f32.mxu0 0.0
    %202 = vmatmul.mubr.f32.gmra.mrb[0].mxu0 %v53
    %v203 = vpop.f32.mrb[0].mxu0
    %v204 = vadd.f32 0.0, %v203
    %v205 = vpop.f32.mrb[0].mxu0
    %206 = vmatprep.mubr.f32.mxu0 0.0
    %207 = vmatmul.mubr.f32.gmra.mrb[0].mxu0 %v54
    %v208 = vpop.f32.mrb[0].mxu0
    %v209 = vadd.f32 0.0, %v208
    %v210 = vpop.f32.mrb[0].mxu0
    %211 = vmatprep.mubr.f32.mxu0 0.0
    %212 = vmatmul.mubr.f32.gmra.mrb[0].mxu0 %v55
    %v213 = vpop.f32.mrb[0].mxu0
    %v214 = vadd.f32 0.0, %v213
    %v215 = vpop.f32.mrb[0].mxu0
    %216 = vdwg.mxu0
    %v217 = vpack.c.bf16 %v144, %v139
    %v218 = vpack.c.bf16 %v154, %v149
    %v219 = vpack.c.bf16 %v164, %v159
    %v220 = vpack.c.bf16 %v174, %v169
    %v221 = vpack.c.bf16 %v184, %v179
    %v222 = vpack.c.bf16 %v194, %v189
    %v223 = vpack.c.bf16 %v204, %v199
    %v224 = vpack.c.bf16 %v214, %v209
    %v233 = vunpack.c.l.b16 %v217
    %v234 = vunpack.c.h.b16 %v217
    %v235 = vunpack.c.l.b16 %v218
    %v236 = vunpack.c.h.b16 %v218
    %v237 = vunpack.c.l.b16 %v219
    %v238 = vunpack.c.h.b16 %v219
    %v239 = vunpack.c.l.b16 %v220
    %v240 = vunpack.c.h.b16 %v220
    %v241 = vunpack.c.l.b16 %v221
    %v242 = vunpack.c.h.b16 %v221
    %v243 = vunpack.c.l.b16 %v222
    %v244 = vunpack.c.h.b16 %v222
    %v245 = vunpack.c.l.b16 %v223
    %v246 = vunpack.c.h.b16 %v223
    %v247 = vunpack.c.l.b16 %v224
    %v248 = vunpack.c.h.b16 %v224
    %v249 = vpack.c.b16 %v233, %v233
    %v250 = vpack.c.b16 %v234, %v234
    %v251 = vpack.c.b16 %v235, %v235
    %v252 = vpack.c.b16 %v236, %v236
    %v253 = vpack.c.b16 %v237, %v237
    %v254 = vpack.c.b16 %v238, %v238
    %v255 = vpack.c.b16 %v239, %v239
    %v256 = vpack.c.b16 %v240, %v240
    %v257 = vpack.c.b16 %v241, %v241
    %v258 = vpack.c.b16 %v242, %v242
    %v259 = vpack.c.b16 %v243, %v243
    %v260 = vpack.c.b16 %v244, %v244
    %v261 = vpack.c.b16 %v245, %v245
    %v262 = vpack.c.b16 %v246, %v246
    %v263 = vpack.c.b16 %v247, %v247
    %v264 = vpack.c.b16 %v248, %v248
    %281 = vst [vmem:[#allocation7] sm:$0xf] %v249
    %282 = vst [vmem:[#allocation7 + $0x4] sm:$0xf] %v250
    %283 = vst [vmem:[#allocation7 + $0x8] sm:$0xf] %v251
    %284 = vst [vmem:[#allocation7 + $0xc] sm:$0xf] %v252
    %285 = vst [vmem:[#allocation7 + $0x10] sm:$0xf] %v253
    %286 = vst [vmem:[#allocation7 + $0x14] sm:$0xf] %v254
    %287 = vst [vmem:[#allocation7 + $0x18] sm:$0xf] %v255
    %288 = vst [vmem:[#allocation7 + $0x1c] sm:$0xf] %v256
    %289 = vst [vmem:[#allocation7 + $0x20] sm:$0xf] %v257
    %290 = vst [vmem:[#allocation7 + $0x24] sm:$0xf] %v258
    %291 = vst [vmem:[#allocation7 + $0x28] sm:$0xf] %v259
    %292 = vst [vmem:[#allocation7 + $0x2c] sm:$0xf] %v260
    %293 = vst [vmem:[#allocation7 + $0x30] sm:$0xf] %v261
    %294 = vst [vmem:[#allocation7 + $0x34] sm:$0xf] %v262
    %295 = vst [vmem:[#allocation7 + $0x38] sm:$0xf] %v263
    %296 = vst [vmem:[#allocation7 + $0x3c] sm:$0xf] %v264
    // Predicated region
    $region18: #{tpu_custom_call.1} parent=1 // pred_check
      _
    $region19: #{tpu_custom_call.1} parent=1 // pred_check_branch
      %298 = sbr.rel (0) target = $region21
    $region20: #{tpu_custom_call.1} parent=1 // pred_region
      %s300 = ssub.s32 1024, 1024
      %301 = vsyncadd [#allocation4], %s300
      %s302 = sshll.u32 [#allocation7], 4
      %s303 = int_to_ptr.vmem [resolvable:$true] %s302
      %308 = dma.vmem_to_hbm [thread:$0]  %s303, 1024, %s2, [#allocation4], 64, 64, 4
    $region21: #{tpu_custom_call.1} parent=1 // pred_fallthru
      _
    // Predicated region
    $region22: #{tpu_custom_call.1} parent=1 // pred_check
      _
    $region23: #{tpu_custom_call.1} parent=1 // pred_check_branch
      %310 = sbr.rel (0) target = $region25
    $region24: #{tpu_custom_call.1} parent=1 // pred_region
      %311 = dma.done [#allocation4], 1024
    $region25: #{tpu_custom_call.1} parent=1 // pred_fallthru
      _
    %312 = vsyncpa [#allocation3], 1
    %313 = vsyncpa [#allocation6], 1
    %314 = vsyncpa [#allocation4], 1

</llo_original>
